<compile_context>
chip_gen: v6e
topology: v6e:2x2x1
jax: 0.10.0
libtpu: 0.0.40
codegen_flags: <defaults>
</compile_context>

<pallas_src>
import functools

import jax
import jax.numpy as jnp
from jax.experimental import pallas as pl
from jax.experimental.pallas import tpu as pltpu


DEFAULT_TM = 256
DEFAULT_TN = 1024
DEFAULT_TK = 1024

_VMEM_LIMIT_BYTES = 48 * 1024 * 1024  # > default scoped limit, < v7x physical.


def _round_up(x, m):
    return ((x + m - 1) // m) * m


def _pick_tile(requested, padded_dim):
    """Largest multiple of 128 that is <= requested and divides padded_dim.

    padded_dim is always a multiple of 128 (pack_masked_weight pads to 128),
    so this terminates at 128 in the worst case. Pure-Python static math.
    """
    t = min(requested, padded_dim)
    t = max(128, (t // 128) * 128)
    while padded_dim % t:
        t -= 128
    return t


# ---------------------------------------------------------------------------
# Kernels
# ---------------------------------------------------------------------------
def _matmul_kernel_acc(x_ref, wt_ref, o_ref, acc_ref):
    """One (tm, tn) output tile; K accumulated across grid axis 2 (last)."""
    k = pl.program_id(2)

    @pl.when(k == 0)
    def _init():
        acc_ref[...] = jnp.zeros_like(acc_ref)

    x = x_ref[...]
    if x.dtype != wt_ref.dtype:          # in-kernel cast (hidden under MXU)
        x = x.astype(wt_ref.dtype)
    acc_ref[...] += jnp.dot(x, wt_ref[...], preferred_element_type=jnp.float32)

    @pl.when(k == pl.num_programs(2) - 1)
    def _finalize():
        o_ref[...] = acc_ref[...].astype(o_ref.dtype)


def _matmul_kernel_single_k(x_ref, wt_ref, o_ref):
    """Fast path when the whole K dimension fits in one tile: no scratch,
    no init/finalize passes over the output tile."""
    x = x_ref[...]
    if x.dtype != wt_ref.dtype:
        x = x.astype(wt_ref.dtype)
    o_ref[...] = jnp.dot(
        x, wt_ref[...], preferred_element_type=jnp.float32
    ).astype(o_ref.dtype)


# ---------------------------------------------------------------------------
# One-time parameter packing (hoisted out of the per-call hot path)
# ---------------------------------------------------------------------------
def pack_masked_weight(weight, *, compute_dtype=jnp.bfloat16):
    """Transpose (out,in)->(in,out), zero-pad K/N to multiples of 128, and cast
    to the MXU compute dtype (bf16 by default: halves weight HBM traffic and is
    the only fast MXU path on v5e). Done once at init, not per call."""
    out_sz, in_sz = weight.shape
    k_pad = _round_up(in_sz, 128)
    n_pad = _round_up(out_sz, 128)
    w_t = weight.T
    if (k_pad, n_pad) != (in_sz, out_sz):
        w_t = jnp.pad(w_t, ((0, k_pad - in_sz), (0, n_pad - out_sz)))
    w_t = w_t.astype(compute_dtype)
    # Only w_t is a traced leaf; the ints stay static Python values.
    return {"w_t": w_t, "in_size": int(in_sz), "out_size": int(out_sz)}


# ---------------------------------------------------------------------------
# Forward
# ---------------------------------------------------------------------------
@functools.partial(
    jax.jit, static_argnames=("in_size", "out_size", "tm", "tn", "tk")
)
def _masked_linear_call(x, w_t, *, in_size, out_size, tm, tn, tk):
    b, x_in = x.shape                     # static under jit
    assert x_in == in_size, (x_in, in_size)
    k_pad, n_pad = w_t.shape
    compute_dtype = w_t.dtype
    out_dtype = x.dtype

    # Round the M tile to the compute dtype's sublane packing multiple.
    itemsize = jnp.dtype(compute_dtype).itemsize
    tm_sub = {4: 8, 2: 16, 1: 32}.get(itemsize, 8)
    tm_eff = max(tm_sub, min(_round_up(tm, tm_sub), _round_up(b, tm_sub)))
    m_pad = _round_up(b, tm_eff)

    tn_eff = _pick_tile(tn, n_pad)
    tk_eff = _pick_tile(tk, k_pad)

    m_tiles = m_pad // tm_eff
    n_tiles = n_pad // tn_eff
    # v7x megacore: make sure there are >= 2 parallel (M,N) tiles if possible.
    if m_tiles == 1 and n_tiles == 1 and n_pad >= 256:
        tn_eff = n_pad // 2 if n_pad % 256 == 0 else 128
        n_tiles = n_pad // tn_eff
    k_tiles = k_pad // tk_eff

    # Pad x only if actually needed (avoid a wrapper-side HBM round trip).
    if (m_pad, k_pad) != (b, x_in):
        x_p = jnp.pad(x, ((0, m_pad - b), (0, k_pad - x_in)))
    else:
        x_p = x

    cost = pl.CostEstimate(
        flops=2 * m_pad * n_pad * k_pad,
        transcendentals=0,
        bytes_accessed=(m_pad * k_pad * x_p.dtype.itemsize
                        + k_pad * n_pad * itemsize
                        + m_pad * n_pad * jnp.dtype(out_dtype).itemsize),
    )

    if k_tiles == 1:
        y_pad = pl.pallas_call(
            _matmul_kernel_single_k,
            out_shape=jax.ShapeDtypeStruct((m_pad, n_pad), out_dtype),
            grid_spec=pltpu.PrefetchScalarGridSpec(
                num_scalar_prefetch=0,
                grid=(m_tiles, n_tiles),
                in_specs=[
                    pl.BlockSpec((tm_eff, k_pad), lambda i, j: (i, 0)),
                    pl.BlockSpec((k_pad, tn_eff), lambda i, j: (0, j)),
                ],
                out_specs=pl.BlockSpec((tm_eff, tn_eff), lambda i, j: (i, j)),
            ),
            compiler_params=pltpu.CompilerParams(
                dimension_semantics=("parallel", "parallel"),
                vmem_limit_bytes=_VMEM_LIMIT_BYTES,
            ),
            cost_estimate=cost,
        )(x_p, w_t)
    else:
        y_pad = pl.pallas_call(
            _matmul_kernel_acc,
            out_shape=jax.ShapeDtypeStruct((m_pad, n_pad), out_dtype),
            grid_spec=pltpu.PrefetchScalarGridSpec(
                num_scalar_prefetch=0,
                grid=(m_tiles, n_tiles, k_tiles),
                in_specs=[
                    pl.BlockSpec((tm_eff, tk_eff), lambda i, j, k: (i, k)),
                    pl.BlockSpec((tk_eff, tn_eff), lambda i, j, k: (k, j)),
                ],
                out_specs=pl.BlockSpec((tm_eff, tn_eff), lambda i, j, k: (i, j)),
                scratch_shapes=[pltpu.VMEM((tm_eff, tn_eff), jnp.float32)],
            ),
            compiler_params=pltpu.CompilerParams(
                dimension_semantics=("parallel", "parallel", "arbitrary"),
                vmem_limit_bytes=_VMEM_LIMIT_BYTES,
            ),
            cost_estimate=cost,
        )(x_p, w_t)

    # Slice only when padding was added.
    if (m_pad, n_pad) != (b, out_size):
        y_pad = y_pad[:b, :out_size]
    return y_pad


def masked_linear_forward(x, packed, *, tm=DEFAULT_TM, tn=DEFAULT_TN,
                          tk=DEFAULT_TK):
    """x: (B, in_size); packed from pack_masked_weight. Returns (B, out_size)."""
    return _masked_linear_call(
        x, packed["w_t"],
        in_size=packed["in_size"], out_size=packed["out_size"],
        tm=tm, tn=tn, tk=tk,
    )


# ---------------------------------------------------------------------------
# Parameter init (re-implements MaskedLinearLayer.__init__)
# ---------------------------------------------------------------------------
def init_masked_linear_params(key, input_size, output_size):
    k_mask, k_w = jax.random.split(key)
    mask = (jax.random.uniform(k_mask, (output_size, input_size)) > 0.5).astype(
        jnp.float32
    )
    # n_in_mask = sqrt(#input features with at least one unmasked weight)
    n_in_mask = jnp.sqrt(jnp.sum((jnp.sum(mask, axis=0) > 0).astype(jnp.float32)))
    bound = 1.0 / n_in_mask
    weight = jax.random.uniform(
        k_w, (output_size, input_size), minval=-bound, maxval=bound
    )
    weight = weight * mask  # masked weights are exactly zero in the forward
    # TODO(synk): the gradient-masking hook (register_hook) is backward-only
    # and has no forward-pass equivalent; forward only needs the masked weight.
    return weight, mask


if __name__ == "__main__":
    key = jax.random.PRNGKey(0)
    k_param, k_x, k_param2, k_x2 = jax.random.split(key, 4)

    # --- Small case matching the module's typical use ----------------------
    batch, input_size, output_size = 8, 32, 16
    weight, mask = init_masked_linear_params(k_param, input_size, output_size)
    x = jax.random.normal(k_x, (batch, input_size), dtype=jnp.float32)
    y_ref = x @ weight.T

    params_bf16 = pack_masked_weight(weight)  # bf16 weight (default)
    y = jax.block_until_ready(masked_linear_forward(x, params_bf16))
    assert y.shape == (batch, output_size)
    assert jnp.allclose(y, y_ref, atol=2e-2, rtol=2e-2)

    params_f32 = pack_masked_weight(weight, compute_dtype=jnp.float32)
    y32 = jax.block_until_ready(masked_linear_forward(x, params_f32))
    assert jnp.allclose(y32, y_ref, atol=1e-5, rtol=1e-5)

    # --- Multi-tile case: exercises K accumulation, M/N tiling, pad + slice -
    b2, in2, out2 = 24, 320, 200   # K pads 320->384, N pads 200->256
    w2, _ = init_masked_linear_params(k_param2, in2, out2)
    x2 = jax.random.normal(k_x2, (b2, in2), dtype=jnp.float32)
    y2_ref = x2 @ w2.T

    params2_f32 = pack_masked_weight(w2, compute_dtype=jnp.float32)
    y2 = jax.block_until_ready(
        masked_linear_forward(x2, params2_f32, tm=8, tn=128, tk=128)
    )
    assert y2.shape == (b2, out2)
    assert jnp.allclose(y2, y2_ref, atol=1e-4, rtol=1e-4)

    params2_bf16 = pack_masked_weight(w2)
    y2b = jax.block_until_ready(
        masked_linear_forward(x2, params2_bf16, tm=16, tn=128, tk=128)
    )
    assert y2b.shape == (b2, out2)
    assert jnp.allclose(y2b, y2_ref, atol=5e-2, rtol=5e-2)

    print("KERNEL_OK")
</pallas_src>

<mosaic_0001>
module attributes {stable_mosaic.version = 11 : i64} {
  func.func @_matmul_kernel_single_k(%arg0: i32, %arg1: i32, %arg2: memref<16x128xf32, #tpu.memory_space<vmem>>, %arg3: memref<128x128xbf16, #tpu.memory_space<vmem>>, %arg4: memref<16x128xf32, #tpu.memory_space<vmem>>) attributes {dimension_semantics = [#tpu.dimension_semantics<parallel>, #tpu.dimension_semantics<parallel>], iteration_bounds = array<i64: 1, 1>, scalar_prefetch = 0 : i64, scratch_operands = 0 : i64, tpu.core_type = #tpu.core_type<tc>, window_params = [{transform_indices = @transform_0, window_bounds = array<i64: 16, 128>}, {transform_indices = @transform_1, window_bounds = array<i64: 128, 128>}, {transform_indices = @transform_2, window_bounds = array<i64: 16, 128>}]} {
    %c0 = arith.constant 0 : index
    %c0_0 = arith.constant 0 : index
    %0 = vector.load %arg2[%c0, %c0_0] : memref<16x128xf32, #tpu.memory_space<vmem>>, vector<16x128xf32>
    %1 = arith.truncf %0 : vector<16x128xf32> to vector<16x128xbf16>
    %c0_1 = arith.constant 0 : index
    %c0_2 = arith.constant 0 : index
    %2 = vector.load %arg3[%c0_1, %c0_2] : memref<128x128xbf16, #tpu.memory_space<vmem>>, vector<128x128xbf16>
    %cst = arith.constant dense<0.000000e+00> : vector<16x128xf32>
    %3 = tpu.matmul %1, %2, %cst {dimension_numbers = #tpu.dot_dimension_numbers<[1], [0], [0], [1], [0, 0, 1, 1], [], []>} : vector<16x128xbf16>, vector<128x128xbf16>, vector<16x128xf32> -> vector<16x128xf32>
    %c0_3 = arith.constant 0 : index
    %c0_4 = arith.constant 0 : index
    %4 = vector.load %arg4[%c0_3, %c0_4] : memref<16x128xf32, #tpu.memory_space<vmem>>, vector<16x128xf32>
    tpu.vector_store %arg4[%c0_3, %c0_4], %3 {strides = array<i32>} : memref<16x128xf32, #tpu.memory_space<vmem>>, vector<16x128xf32>,
    return
  }
  func.func @transform_0(%arg0: i32, %arg1: i32) -> (i32, i32) {
    %c0_i32 = arith.constant 0 : i32
    %c0_i32_0 = arith.constant 0 : i32
    return %arg0, %c0_i32 : i32, i32
  }
  func.func @transform_1(%arg0: i32, %arg1: i32) -> (i32, i32) {
    %c0_i32 = arith.constant 0 : i32
    %c0_i32_0 = arith.constant 0 : i32
    return %c0_i32, %arg1 : i32, i32
  }
  func.func @transform_2(%arg0: i32, %arg1: i32) -> (i32, i32) {
    %c0_i32 = arith.constant 0 : i32
    return %arg0, %arg1 : i32, i32
  }
}

</mosaic_0001>

<llo_original>
// kernel: _masked_linear_call.1
$region0: #{_masked_linear_call.1}
  #allocation0 [shape = 'u32[]', space=smem, size = 0x4, offset = 0x4, fixed_abs, tag = 'smem constant byte address 0x4 - core index']
  #allocation1 [shape = 'u32[144,128]{1,0:T(1,128)}', space=vmem, size = 0x12000, scoped, tag = 'internal scratch']
  %s0 = inlined_call_operand.vmem [shape: f32[16,128], index: 0, kind: input, shape index: {}]
  %s1 = inlined_call_operand.hbm [shape: bf16[128,128], index: 1, kind: input, shape index: {}]
  %s2 = inlined_call_operand.vmem [shape: f32[16,128], index: 2, kind: output, shape index: {}]
  %s3 = sld [smem:[#allocation0]]
  $region22: #{_masked_linear_call.1} parent=0
    _
  %s5 = ssub.s32 1, %s3
  %s6 = scalar_select 0, %s5, %s3
  $region1: #{_masked_linear_call.1} parent=0
    #allocation2 [shape = 'u8[32768]{0}', space=vmem, size = 0x8000, scoped, tag = 'input window, operand 1, single buffered']
    #allocation3 [shape = 's32[1]{0}', space=sflag, size = 0x4, scoped, tag = 'scoped memory for _masked_linear_call.1']
    %7 = vsyncpa [#allocation3], 0
    // Predicated region
    $region2: #{_masked_linear_call.1} parent=1 // pred_check
      _
    $region3: #{_masked_linear_call.1} parent=1 // pred_check_branch
      %9 = sbr.rel (0) target = $region5
    $region4: #{_masked_linear_call.1} parent=1 // pred_region
      _
    $region5: #{_masked_linear_call.1} parent=1 // pred_fallthru
      _
    // Predicated region
    $region6: #{_masked_linear_call.1} parent=1 // pred_check
      _
    $region7: #{_masked_linear_call.1} parent=1 // pred_check_branch
      %11 = sbr.rel (0) target = $region9
    $region8: #{_masked_linear_call.1} parent=1 // pred_region
      %s13 = ssub.s32 1024, 1024
      %14 = vsyncadd [#allocation3], %s13
      %s15 = sshll.u32 [#allocation2], 4
      %s16 = int_to_ptr.vmem [resolvable:$true] %s15
      %21 = dma.hbm_to_vmem [thread:$0]  %s1, 1024, %s16, [#allocation3], 64, 64, 4
    $region9: #{_masked_linear_call.1} parent=1 // pred_fallthru
      _
    // Predicated region
    $region10: #{_masked_linear_call.1} parent=1 // pred_check
      _
    $region11: #{_masked_linear_call.1} parent=1 // pred_check_branch
      %23 = sbr.rel (0) target = $region13
    $region12: #{_masked_linear_call.1} parent=1 // pred_region
      %24 = dma.done [#allocation3], 1024
    $region13: #{_masked_linear_call.1} parent=1 // pred_fallthru
      _
    %v26 = vld [vmem:[%s0] sm:$0xff]
    %v27 = vld [vmem:[%s0 + $0x8] sm:$0xff]
    %v28 = vpack.c.bf16 %v27, %v26
    %v29 = vld [vmem:[#allocation2] sm:$0xf]
    %v30 = vld [vmem:[#allocation2 + $0x4] sm:$0xf]
    %v31 = vld [vmem:[#allocation2 + $0x8] sm:$0xf]
    %v32 = vld [vmem:[#allocation2 + $0xc] sm:$0xf]
    %v33 = vld [vmem:[#allocation2 + $0x10] sm:$0xf]
    %v34 = vld [vmem:[#allocation2 + $0x14] sm:$0xf]
    %v35 = vld [vmem:[#allocation2 + $0x18] sm:$0xf]
    %v36 = vld [vmem:[#allocation2 + $0x1c] sm:$0xf]
    %v37 = vld [vmem:[#allocation2 + $0x20] sm:$0xf]
    %v38 = vld [vmem:[#allocation2 + $0x24] sm:$0xf]
    %v39 = vld [vmem:[#allocation2 + $0x28] sm:$0xf]
    %v40 = vld [vmem:[#allocation2 + $0x2c] sm:$0xf]
    %v41 = vld [vmem:[#allocation2 + $0x30] sm:$0xf]
    %v42 = vld [vmem:[#allocation2 + $0x34] sm:$0xf]
    %v43 = vld [vmem:[#allocation2 + $0x38] sm:$0xf]
    %v44 = vld [vmem:[#allocation2 + $0x3c] sm:$0xf]
    %v61 = vunpack.c.l.b16 %v29
    %v62 = vunpack.c.l.b16 %v30
    %v63 = vunpack.c.l.b16 %v31
    %v64 = vunpack.c.l.b16 %v32
    %v65 = vunpack.c.l.b16 %v33
    %v66 = vunpack.c.l.b16 %v34
    %v67 = vunpack.c.l.b16 %v35
    %v68 = vunpack.c.l.b16 %v36
    %v69 = vunpack.c.l.b16 %v37
    %v70 = vunpack.c.l.b16 %v38
    %v71 = vunpack.c.l.b16 %v39
    %v72 = vunpack.c.l.b16 %v40
    %v73 = vunpack.c.l.b16 %v41
    %v74 = vunpack.c.l.b16 %v42
    %v75 = vunpack.c.l.b16 %v43
    %v76 = vunpack.c.l.b16 %v44
    %v77 = vpack.c.b16 %v62, %v61
    %v78 = vpack.c.b16 %v64, %v63
    %v79 = vpack.c.b16 %v66, %v65
    %v80 = vpack.c.b16 %v68, %v67
    %v81 = vpack.c.b16 %v70, %v69
    %v82 = vpack.c.b16 %v72, %v71
    %v83 = vpack.c.b16 %v74, %v73
    %v84 = vpack.c.b16 %v76, %v75
    %93 = vmatprep.subr.bf16.mxu0 0
    %94 = vmatpush1.bf16.msra.mxu0 %v84
    %95 = vmatprep.subr.bf16.mxu0 0
    %96 = vmatpush1.bf16.msra.mxu0 %v83
    %97 = vmatprep.subr.bf16.mxu0 0
    %98 = vmatpush1.bf16.msra.mxu0 %v82
    %99 = vmatprep.subr.bf16.mxu0 0
    %100 = vmatpush1.bf16.msra.mxu0 %v81
    %101 = vmatprep.subr.bf16.mxu0 0
    %102 = vmatpush1.bf16.msra.mxu0 %v80
    %103 = vmatprep.subr.bf16.mxu0 0
    %104 = vmatpush1.bf16.msra.mxu0 %v79
    %105 = vmatprep.subr.bf16.mxu0 0
    %106 = vmatpush1.bf16.msra.mxu0 %v78
    %107 = vmatprep.subr.bf16.mxu0 0
    %108 = vmatpush1.bf16.msra.mxu0 %v77
    %109 = vmatprep.subr.bf16.mxu0 0
    %110 = vmatpush2.bf16.msra.mxu0 0
    %111 = vmatprep.subr.bf16.mxu0 0
    %112 = vmatpush2.bf16.msra.mxu0 0
    %113 = vmatprep.subr.bf16.mxu0 0
    %114 = vmatpush2.bf16.msra.mxu0 0
    %115 = vmatprep.subr.bf16.mxu0 0
    %116 = vmatpush2.bf16.msra.mxu0 0
    %117 = vmatprep.subr.bf16.mxu0 0
    %118 = vmatpush2.bf16.msra.mxu0 0
    %119 = vmatprep.subr.bf16.mxu0 0
    %120 = vmatpush2.bf16.msra.mxu0 0
    %121 = vmatprep.subr.bf16.mxu0 0
    %122 = vmatpush2.bf16.msra.mxu0 0
    %123 = vmatprep.subr.bf16.mxu0 0
    %124 = vmatpush2.bf16.msra.mxu0 0
    %125 = vmatprep.mubr.bf16.mxu0 0
    %126 = vmatmul.mubr.bf16.gmra.mxu0 %v28
    %v127 = vpop.f32.mrf.mxu0
    %v128 = vadd.f32 0.0, %v127
    %v129 = vpop.f32.mrf.mxu0
    %v130 = vpop.f32.mrf.mxu0
    %v131 = vadd.f32 0.0, %v130
    %v132 = vpop.f32.mrf.mxu0
    %133 = vdwg.mxu0
    %134 = vst [vmem:[%s2] sm:$0xff] %v128
    %135 = vst [vmem:[%s2 + $0x8] sm:$0xff] %v131
    // Predicated region
    $region14: #{_masked_linear_call.1} parent=1 // pred_check
      _
    $region15: #{_masked_linear_call.1} parent=1 // pred_check_branch
      %137 = sbr.rel (0) target = $region17
    $region16: #{_masked_linear_call.1} parent=1 // pred_region
      _
    $region17: #{_masked_linear_call.1} parent=1 // pred_fallthru
      _
    // Predicated region
    $region18: #{_masked_linear_call.1} parent=1 // pred_check
      _
    $region19: #{_masked_linear_call.1} parent=1 // pred_check_branch
      %139 = sbr.rel (0) target = $region21
    $region20: #{_masked_linear_call.1} parent=1 // pred_region
      _
    $region21: #{_masked_linear_call.1} parent=1 // pred_fallthru
      _
    %140 = vsyncpa [#allocation3], 1

</llo_original>
